<compile_context>
chip_gen: v7x
topology: tpu7x:2x2x1
jax: 0.10.0
libtpu: 0.0.40
codegen_flags: <defaults>
</compile_context>

<pallas_src>
import functools

import jax
import jax.numpy as jnp
from jax.experimental import pallas as pl
from jax.experimental.pallas import tpu as pltpu


def _round_up(x, m):
    return ((x + m - 1) // m) * m


def _sublane_granule(dtype):
    """Sublane-packing granule for the row (M) tile: 8 f32, 16 bf16, 32 int8/fp8."""
    return max(8, 32 // jnp.dtype(dtype).itemsize)


def _vmem_budget():
    """Usable VMEM: physical capacity minus ~15% headroom for compiler-internal
    scratch / semaphores.  Falls back to the v7x capacity (the smallest of
    v5e/v6e/v7x) if the query is unavailable."""
    cap = None
    try:
        cap = getattr(pltpu.get_tpu_info(), "vmem_capacity_bytes", None)
    except Exception:
        cap = None
    if not cap:
        cap = 64 * 1024 * 1024
    return int(cap * 0.85)


def _est_vmem(tm, tv, tk, xb, wb, bb, ob, scratch):
    """Double-buffered input tiles + double-buffered output tile (+ f32 acc)."""
    est = 2 * (tm * tk * xb + tk * tv * wb + tv * bb) + 2 * tm * tv * ob
    if scratch:
        est += tm * tv * 4
    return est


def _pick_dim_tile(user, default, dim, granule, prefer=None):
    """Tile along a lane-major axis (V or D).

    Full extent if the axis fits in one default tile (full-extent blocks are
    exempt from the (8, 128) rule).  Otherwise prefer 256-aligned tiles
    (v6e/v7x MXU) then 128-aligned tiles that DIVIDE the axis, so no HBM-level
    padding of the weight is needed; only accept divisors >= default/2 so we
    never trade lane-density / re-read traffic for divisibility."""
    if user is not None:
        t = min(int(user), dim)
        if t < dim:
            assert t % granule == 0, f"tile {t} must be a multiple of {granule}"
        return t
    if dim <= default:
        return dim
    grans = [g for g in ((prefer, granule) if prefer is not None else (granule,)) if g]
    floor = max(granule, default // 2)
    for g in grans:
        t = (default // g) * g
        while t >= max(g, floor):
            if dim % t == 0:
                return t
            t -= g
    return default  # no clean divisor (axis not 128-aligned) -> caller pads


def _choose_tm(user, M, granule, fits):
    """Largest row tile (<= 2048) whose double-buffered footprint fits the VMEM
    budget; prefers a tile that divides M so the x pad and logits slice vanish."""
    if user is not None:
        t = min(int(user), M)
        if t < M:
            assert t % granule == 0, f"tm {t} must be a multiple of {granule}"
        return t
    t = 2048
    while t > 256 and not fits(min(t, M)):
        t //= 2
    if t >= M:
        return M  # full extent
    t = (t // granule) * granule
    for s in range(t, max(granule, t // 2) - 1, -granule):
        if M % s == 0:
            return s
    return t


# ------------------------------ kernels -------------------------------------


def _linear_kernel_fused(x_ref, w_ref, b_ref, o_ref):
    """Whole-D contraction in one grid step: no accumulator, no K branches."""
    acc = jnp.dot(x_ref[...], w_ref[...], preferred_element_type=jnp.float32)
    o_ref[...] = (acc + b_ref[...].astype(jnp.float32)).astype(o_ref.dtype)


def _linear_kernel_f32(x_ref, w_ref, b_ref, o_ref):
    """K-split, f32 output: accumulate straight into the resident output block."""
    k = pl.program_id(2)

    @pl.when(k == 0)
    def _():
        o_ref[...] = jnp.broadcast_to(b_ref[...].astype(jnp.float32), o_ref.shape)

    o_ref[...] += jnp.dot(x_ref[...], w_ref[...], preferred_element_type=jnp.float32)


def _linear_kernel_acc(x_ref, w_ref, b_ref, o_ref, acc_ref):
    """K-split, narrow output dtype: f32 scratch accumulator, cast once at the end."""
    k = pl.program_id(2)

    @pl.when(k == 0)
    def _():
        acc_ref[...] = jnp.zeros_like(acc_ref)

    acc_ref[...] += jnp.dot(x_ref[...], w_ref[...], preferred_element_type=jnp.float32)

    @pl.when(k == pl.num_programs(2) - 1)
    def _():
        o_ref[...] = (acc_ref[...] + b_ref[...].astype(jnp.float32)).astype(o_ref.dtype)


# ------------------------------ wrapper --------------------------------------


def prepare_weight(weight):
    """One-time, parameter-level conversion of an nn.Linear (V, D) weight into the
    (D, V) layout the kernel consumes, so no transpose (HBM or per-tile XLU) is
    paid on the hot path.  Call once at init and pass the result as weight_t=."""
    return jnp.asarray(weight).T


def output_classifier(x, weight=None, bias=None, *, weight_t=None,
                      tm=None, tv=None, tk=None, weight_buffers=None):
    """
    x:        (B, S, D)  activations from the decoder.
    weight:   (V, D)     nn.Linear layout (optional if weight_t is given).
    bias:     (V,)
    weight_t: (D, V)     pre-transposed weight (see prepare_weight); preferred --
                         avoids a per-call HBM transpose of the largest array.
    returns   (B, S, V)  raw logits == x @ weight.T + bias
    """
    if weight_t is None:
        # Per-call HBM transpose; for repeated calls prefer prepare_weight() once.
        weight_t = weight.T
    B, S, D = x.shape
    Dw, V = weight_t.shape
    assert Dw == D, (weight_t.shape, D)
    M = B * S
    out_dtype = x.dtype

    xb = jnp.dtype(x.dtype).itemsize
    wb = jnp.dtype(weight_t.dtype).itemsize
    bb = jnp.dtype(bias.dtype).itemsize
    ob = jnp.dtype(out_dtype).itemsize

    budget = _vmem_budget()
    m_granule = _sublane_granule(x.dtype)

    # Lane-dense, 256-aligned vocab tiles (unmasked vst on the output stream).
    tv = _pick_dim_tile(tv, 1024, V, 128, prefer=256)

    # Take the whole reduction dim when it still leaves room for tm >= 1024
    # (drops the K grid axis, the accumulator RMW and the init/epilogue
    # branches); otherwise tile K with tk >= 512.
    if tk is not None:
        tk = min(int(tk), D)
        if tk < D:
            assert tk % 128 == 0, f"tk {tk} must be a multiple of 128"
    elif _est_vmem(min(1024, M), tv, D, xb, wb, bb, ob, False) <= budget:
        tk = D
    else:
        tk = _pick_dim_tile(None, 512, D, 128, prefer=256)
    k_split = tk < D
    use_scratch = k_split and out_dtype != jnp.float32

    # Grow tm until the double-buffered footprint reaches the VMEM budget:
    # bigger tm => fewer HBM re-reads of the (V, D) weight (the binding cost on
    # v6e/v7x at small tm).
    fits = lambda t: _est_vmem(t, tv, tk, xb, wb, bb, ob, use_scratch) <= budget
    tm = _choose_tm(tm, M, m_granule, fits)

    Mp = M if tm == M else _round_up(M, tm)
    Vp = V if tv == V else _round_up(V, tv)
    Dp = D if tk == D else _round_up(D, tk)

    x2 = x.reshape(M, D)
    if (Mp, Dp) != (M, D):
        x2 = jnp.pad(x2, ((0, Mp - M), (0, Dp - D)))
    w2 = weight_t
    if (Dp, Vp) != (D, V):
        # Rare (V or D not 128-aligned): full HBM round trip of the weight.
        w2 = jnp.pad(w2, ((0, Dp - D), (0, Vp - V)))
    b2 = bias.reshape(1, V)
    if Vp != V:
        b2 = jnp.pad(b2, ((0, 0), (0, Vp - V)))

    def _w_spec(shape, idx_map):
        if weight_buffers is not None and int(weight_buffers) > 2:
            # Only if profiling shows an exposed DMA bubble at vocab-tile edges.
            return pl.BlockSpec(shape, idx_map,
                                pipeline_mode=pl.Buffered(int(weight_buffers)))
        return pl.BlockSpec(shape, idx_map)

    if k_split:
        grid = (Mp // tm, Vp // tv, Dp // tk)
        in_specs = [
            pl.BlockSpec((tm, tk), lambda i, j, k: (i, k)),   # x tile
            _w_spec((tk, tv), lambda i, j, k: (k, j)),        # weight tile (D, V)
            pl.BlockSpec((1, tv), lambda i, j, k: (0, j)),    # bias tile
        ]
        out_specs = pl.BlockSpec((tm, tv), lambda i, j, k: (i, j))
        kernel = _linear_kernel_acc if use_scratch else _linear_kernel_f32
        scratch = [pltpu.VMEM((tm, tv), jnp.float32)] if use_scratch else []
        dims = ("parallel", "parallel", "arbitrary")
    else:
        grid = (Mp // tm, Vp // tv)
        in_specs = [
            pl.BlockSpec((tm, tk), lambda i, j: (i, 0)),
            _w_spec((tk, tv), lambda i, j: (0, j)),
            pl.BlockSpec((1, tv), lambda i, j: (0, j)),
        ]
        out_specs = pl.BlockSpec((tm, tv), lambda i, j: (i, j))
        kernel = _linear_kernel_fused
        scratch = []
        dims = ("parallel", "parallel")

    est = _est_vmem(tm, tv, tk, xb, wb, bb, ob, use_scratch)
    vmem_limit = int(min(budget, max(est + (8 << 20), 32 << 20)))

    cost = pl.CostEstimate(
        flops=2 * Mp * Vp * Dp,
        transcendentals=0,
        bytes_accessed=(Mp * Dp * xb * (Vp // tv)      # x re-read per vocab tile
                        + Dp * Vp * wb * (Mp // tm)    # weight re-read per row tile
                        + Mp * Vp * ob),               # logits written once
    )

    out2 = pl.pallas_call(
        kernel,
        out_shape=jax.ShapeDtypeStruct((Mp, Vp), out_dtype),
        grid_spec=pltpu.PrefetchScalarGridSpec(
            num_scalar_prefetch=0,
            grid=grid,
            in_specs=in_specs,
            out_specs=out_specs,
            scratch_shapes=scratch,
        ),
        compiler_params=pltpu.CompilerParams(
            dimension_semantics=dims,
            vmem_limit_bytes=vmem_limit,
        ),
        cost_estimate=cost,
    )(x2, w2, b2)

    if (Mp, Vp) != (M, V):
        out2 = out2[:M, :V]
    return out2.reshape(B, S, V)


def init_params(key, d_model, vocab, dtype=jnp.float32):
    """Deterministic nn.Linear-style init: U(-1/sqrt(d_model), 1/sqrt(d_model))."""
    kw, kb = jax.random.split(key)
    bound = 1.0 / float(d_model) ** 0.5
    weight = jax.random.uniform(kw, (vocab, d_model), dtype=jnp.float32,
                                minval=-bound, maxval=bound).astype(dtype)
    bias = jax.random.uniform(kb, (vocab,), dtype=jnp.float32,
                              minval=-bound, maxval=bound).astype(dtype)
    return weight, bias


if __name__ == "__main__":
    key = jax.random.PRNGKey(0)

    # --- test 1: small module shapes, f32, fused (no K split) single-tile grid
    B, S, D, V = 2, 8, 32, 64
    k1, k2, key = jax.random.split(key, 3)
    x = jax.random.normal(k1, (B, S, D), dtype=jnp.float32)
    weight, bias = init_params(k2, D, V)

    fn = jax.jit(output_classifier)
    out = jax.block_until_ready(fn(x, weight, bias))
    ref = x @ weight.T + bias
    assert out.shape == (B, S, V), out.shape
    assert jnp.allclose(out, ref, atol=1e-4, rtol=1e-4), "mismatch (f32 small)"

    # --- test 2: non-divisible dims + explicit small tiles -> padding path,
    #             3-D grid, f32 resident-output K accumulation
    B2, S2, D2, V2 = 2, 24, 160, 200
    k3, k4, key = jax.random.split(key, 3)
    x_t2 = jax.random.normal(k3, (B2, S2, D2), dtype=jnp.float32)
    w_t2, b_t2 = init_params(k4, D2, V2)
    fn2 = jax.jit(functools.partial(output_classifier, tm=16, tv=128, tk=128))
    out2 = jax.block_until_ready(fn2(x_t2, w_t2, b_t2))
    ref2 = x_t2 @ w_t2.T + b_t2
    assert out2.shape == (B2, S2, V2), out2.shape
    assert jnp.allclose(out2, ref2, atol=1e-3, rtol=1e-3), "mismatch (tiled/padded)"

    # --- test 3: bf16 in/out on the fused (no K split) path
    out3 = jax.block_until_ready(
        fn(x.astype(jnp.bfloat16), weight.astype(jnp.bfloat16),
           bias.astype(jnp.bfloat16)))
    assert out3.shape == (B, S, V)
    assert jnp.allclose(out3.astype(jnp.float32), ref, atol=5e-2, rtol=5e-2), \
        "mismatch (bf16 fused)"

    # --- test 4: bf16 + forced K split -> f32 scratch-accumulator path, using a
    #             pre-transposed (parameter-level) (D, V) weight
    B4, S4, D4, V4 = 2, 16, 256, 384
    k5, k6, key = jax.random.split(key, 3)
    x4 = jax.random.normal(k5, (B4, S4, D4), dtype=jnp.float32)
    w4, b4 = init_params(k6, D4, V4)
    x4b = x4.astype(jnp.bfloat16)
    w4b = w4.astype(jnp.bfloat16)
    b4b = b4.astype(jnp.bfloat16)
    w4_t = prepare_weight(w4b)                       # one-time (D, V) layout
    fn4 = jax.jit(functools.partial(output_classifier, tk=128))
    out4 = jax.block_until_ready(fn4(x4b, bias=b4b, weight_t=w4_t))
    ref4 = (x4b.astype(jnp.float32) @ w4b.astype(jnp.float32).T
            + b4b.astype(jnp.float32))
    assert out4.shape == (B4, S4, V4), out4.shape
    assert jnp.allclose(out4.astype(jnp.float32), ref4, atol=5e-2, rtol=5e-2), \
        "mismatch (bf16 k-split)"

    print("KERNEL_OK")
</pallas_src>

<mosaic_0001>
module attributes {stable_mosaic.version = 11 : i64} {
  func.func @_linear_kernel_fused(%arg0: i32, %arg1: i32, %arg2: memref<16x32xf32, #tpu.memory_space<vmem>>, %arg3: memref<32x64xf32, #tpu.memory_space<vmem>>, %arg4: memref<1x64xf32, #tpu.memory_space<vmem>>, %arg5: memref<16x64xf32, #tpu.memory_space<vmem>>) attributes {dimension_semantics = [#tpu.dimension_semantics<parallel>, #tpu.dimension_semantics<parallel>], iteration_bounds = array<i64: 1, 1>, scalar_prefetch = 0 : i64, scratch_operands = 0 : i64, tpu.core_type = #tpu.core_type<tc>, window_params = [{transform_indices = @transform_0, window_bounds = array<i64: 16, 32>}, {transform_indices = @transform_1, window_bounds = array<i64: 32, 64>}, {transform_indices = @transform_2, window_bounds = array<i64: 1, 64>}, {transform_indices = @transform_3, window_bounds = array<i64: 16, 64>}]} {
    %c0 = arith.constant 0 : index
    %c0_0 = arith.constant 0 : index
    %0 = vector.load %arg2[%c0, %c0_0] : memref<16x32xf32, #tpu.memory_space<vmem>>, vector<16x32xf32>
    %c0_1 = arith.constant 0 : index
    %c0_2 = arith.constant 0 : index
    %1 = vector.load %arg3[%c0_1, %c0_2] : memref<32x64xf32, #tpu.memory_space<vmem>>, vector<32x64xf32>
    %cst = arith.constant dense<0.000000e+00> : vector<16x64xf32>
    %2 = tpu.matmul %0, %1, %cst {dimension_numbers = #tpu.dot_dimension_numbers<[1], [0], [0], [1], [0, 0, 1, 1], [], []>} : vector<16x32xf32>, vector<32x64xf32>, vector<16x64xf32> -> vector<16x64xf32>
    %c0_3 = arith.constant 0 : index
    %c0_4 = arith.constant 0 : index
    %3 = vector.load %arg4[%c0_3, %c0_4] : memref<1x64xf32, #tpu.memory_space<vmem>>, vector<1x64xf32>
    %4 = vector.broadcast %3 : vector<1x64xf32> to vector<16x64xf32>
    %5 = arith.addf %2, %4 : vector<16x64xf32>
    %c0_5 = arith.constant 0 : index
    %c0_6 = arith.constant 0 : index
    %6 = vector.load %arg5[%c0_5, %c0_6] : memref<16x64xf32, #tpu.memory_space<vmem>>, vector<16x64xf32>
    tpu.vector_store %arg5[%c0_5, %c0_6], %5 {strides = array<i32>} : memref<16x64xf32, #tpu.memory_space<vmem>>, vector<16x64xf32>,
    return
  }
  func.func @transform_0(%arg0: i32, %arg1: i32) -> (i32, i32) {
    %c0_i32 = arith.constant 0 : i32
    %c0_i32_0 = arith.constant 0 : i32
    return %arg0, %c0_i32 : i32, i32
  }
  func.func @transform_1(%arg0: i32, %arg1: i32) -> (i32, i32) {
    %c0_i32 = arith.constant 0 : i32
    %c0_i32_0 = arith.constant 0 : i32
    return %c0_i32, %arg1 : i32, i32
  }
  func.func @transform_2(%arg0: i32, %arg1: i32) -> (i32, i32) {
    %c0_i32 = arith.constant 0 : i32
    %c0_i32_0 = arith.constant 0 : i32
    return %c0_i32, %arg1 : i32, i32
  }
  func.func @transform_3(%arg0: i32, %arg1: i32) -> (i32, i32) {
    %c0_i32 = arith.constant 0 : i32
    return %arg0, %arg1 : i32, i32
  }
}

</mosaic_0001>

<llo_original>
// kernel: output_classifier.1
$region0: #{output_classifier.1}
  #allocation0 [shape = 'u32[]', space=smem, size = 0x4, offset = 0x4, fixed_abs, tag = 'smem constant byte address 0x4 - core index']
  #allocation1 [shape = 'u32[144,128]{1,0:T(1,128)}', space=vmem, size = 0x12000, scoped, tag = 'internal scratch']
  %s0 = inlined_call_operand.hbm [shape: f32[16,32], index: 0, kind: input, shape index: {}]
  %s1 = inlined_call_operand.hbm [shape: f32[32,64], index: 1, kind: input, shape index: {}]
  %s2 = inlined_call_operand.vmem [shape: f32[1,64], index: 2, kind: input, shape index: {}]
  %s3 = inlined_call_operand.hbm [shape: f32[16,64], index: 3, kind: output, shape index: {}]
  %s4 = sld [smem:[#allocation0]]
  $region30: #{output_classifier.1} parent=0
    _
  %s6 = ssub.s32 1, %s4
  %s7 = scalar_select 0, %s6, %s4
  $region1: #{output_classifier.1} parent=0
    #allocation2 [shape = 'u8[8192]{0}', space=vmem, size = 0x2000, scoped, tag = 'input window, operand 0, single buffered']
    #allocation3 [shape = 's32[1]{0}', space=sflag, size = 0x4, scoped, tag = 'scoped memory for output_classifier.1']
    #allocation4 [shape = 's32[1]{0}', space=sflag, size = 0x4, scoped, tag = 'scoped memory for output_classifier.1']
    #allocation5 [shape = 'u8[16384]{0}', space=vmem, size = 0x4000, scoped, tag = 'input window, operand 1, single buffered']
    #allocation6 [shape = 's32[1]{0}', space=sflag, size = 0x4, scoped, tag = 'scoped memory for output_classifier.1']
    #allocation7 [shape = 'u8[8192]{0}', space=vmem, size = 0x2000, scoped, tag = 'output window, operand 0, single buffered']
    %8 = vsyncpa [#allocation3], 0
    %9 = vsyncpa [#allocation6], 0
    %10 = vsyncpa [#allocation4], 0
    // Predicated region
    $region2: #{output_classifier.1} parent=1 // pred_check
      _
    $region3: #{output_classifier.1} parent=1 // pred_check_branch
      %12 = sbr.rel (0) target = $region5
    $region4: #{output_classifier.1} parent=1 // pred_region
      %s14 = ssub.s32 256, 256
      %15 = vsyncadd [#allocation3], %s14
      %s16 = sshll.u32 [#allocation2], 4
      %s17 = int_to_ptr.vmem [resolvable:$true] %s16
      %22 = dma.hbm_to_vmem [thread:$0]  %s0, 256, %s17, [#allocation3], 128, 128, 8
    $region5: #{output_classifier.1} parent=1 // pred_fallthru
      _
    // Predicated region
    $region6: #{output_classifier.1} parent=1 // pred_check
      _
    $region7: #{output_classifier.1} parent=1 // pred_check_branch
      %24 = sbr.rel (0) target = $region9
    $region8: #{output_classifier.1} parent=1 // pred_region
      %s26 = ssub.s32 512, 512
      %27 = vsyncadd [#allocation6], %s26
      %s28 = sshll.u32 [#allocation5], 4
      %s29 = int_to_ptr.vmem [resolvable:$true] %s28
      %34 = dma.hbm_to_vmem [thread:$0]  %s1, 512, %s29, [#allocation6], 128, 128, 8
    $region9: #{output_classifier.1} parent=1 // pred_fallthru
      _
    // Predicated region
    $region10: #{output_classifier.1} parent=1 // pred_check
      _
    $region11: #{output_classifier.1} parent=1 // pred_check_branch
      %36 = sbr.rel (0) target = $region13
    $region12: #{output_classifier.1} parent=1 // pred_region
      _
    $region13: #{output_classifier.1} parent=1 // pred_fallthru
      _
    // Predicated region
    $region14: #{output_classifier.1} parent=1 // pred_check
      _
    $region15: #{output_classifier.1} parent=1 // pred_check_branch
      %38 = sbr.rel (0) target = $region17
    $region16: #{output_classifier.1} parent=1 // pred_region
      %39 = dma.done [#allocation3], 256
    $region17: #{output_classifier.1} parent=1 // pred_fallthru
      _
    // Predicated region
    $region18: #{output_classifier.1} parent=1 // pred_check
      _
    $region19: #{output_classifier.1} parent=1 // pred_check_branch
      %41 = sbr.rel (0) target = $region21
    $region20: #{output_classifier.1} parent=1 // pred_region
      %42 = dma.done [#allocation6], 512
    $region21: #{output_classifier.1} parent=1 // pred_fallthru
      _
    %v43 = vld [vmem:[#allocation2] sm:$0xff]
    %v44 = vld [vmem:[#allocation2 + $0x8] sm:$0xff]
    %v45 = vld [vmem:[#allocation5] sm:$0xff]
    %v46 = vld [vmem:[#allocation5 + $0x8] sm:$0xff]
    %v47 = vld [vmem:[#allocation5 + $0x10] sm:$0xff]
    %v48 = vld [vmem:[#allocation5 + $0x18] sm:$0xff]
    %v49 = vld [vmem:[%s2] sm:$0x1]
    %v51 = vlaneseq
    %v52 = vshrl.u32 %v51, 7
    %v53 = vsub.s32 0, %v52
    %v54 = vrot.slane %v49, %v53
    %vm56 = vcmask 261120
    %v58 = vsel %vm56, %v43, 0
    %v61 = vsel %vm56, %v44, 0
    %63 = vmatprep.subr.mxu0 0.0
    %64 = vmatpush1.msra.mxu0 %v45
    %65 = vmatprep.subr.mxu0 0.0
    %66 = vmatpush1.msra.mxu0 %v46
    %67 = vmatprep.subr.mxu0 0.0
    %68 = vmatpush1.msra.mxu0 %v47
    %69 = vmatprep.subr.mxu0 0.0
    %70 = vmatpush1.msra.mxu0 %v48
    %71 = vmatprep.subr.mxu0 0.0
    %72 = vmatpush1.msra.mxu0 0.0
    %73 = vmatprep.subr.mxu0 0.0
    %74 = vmatpush1.msra.mxu0 0.0
    %75 = vmatprep.subr.mxu0 0.0
    %76 = vmatpush1.msra.mxu0 0.0
    %77 = vmatprep.subr.mxu0 0.0
    %78 = vmatpush1.msra.mxu0 0.0
    %79 = vmatprep.subr.mxu0 0.0
    %80 = vmatpush1.msra.mxu0 0.0
    %81 = vmatprep.subr.mxu0 0.0
    %82 = vmatpush1.msra.mxu0 0.0
    %83 = vmatprep.subr.mxu0 0.0
    %84 = vmatpush1.msra.mxu0 0.0
    %85 = vmatprep.subr.mxu0 0.0
    %86 = vmatpush1.msra.mxu0 0.0
    %87 = vmatprep.subr.mxu0 0.0
    %88 = vmatpush1.msra.mxu0 0.0
    %89 = vmatprep.subr.mxu0 0.0
    %90 = vmatpush1.msra.mxu0 0.0
    %91 = vmatprep.subr.mxu0 0.0
    %92 = vmatpush1.msra.mxu0 0.0
    %93 = vmatprep.subr.mxu0 0.0
    %94 = vmatpush1.msra.mxu0 0.0
    %95 = vmatprep.subr.mxu0 0.0
    %96 = vmatpush1.msra.mxu0 0.0
    %97 = vmatprep.subr.mxu0 0.0
    %98 = vmatpush1.msra.mxu0 0.0
    %99 = vmatprep.subr.mxu0 0.0
    %100 = vmatpush1.msra.mxu0 0.0
    %101 = vmatprep.subr.mxu0 0.0
    %102 = vmatpush1.msra.mxu0 0.0
    %103 = vmatprep.subr.mxu0 0.0
    %104 = vmatpush1.msra.mxu0 0.0
    %105 = vmatprep.subr.mxu0 0.0
    %106 = vmatpush1.msra.mxu0 0.0
    %107 = vmatprep.subr.mxu0 0.0
    %108 = vmatpush1.msra.mxu0 0.0
    %109 = vmatprep.subr.mxu0 0.0
    %110 = vmatpush1.msra.mxu0 0.0
    %111 = vmatprep.subr.mxu0 0.0
    %112 = vmatpush1.msra.mxu0 0.0
    %113 = vmatprep.subr.mxu0 0.0
    %114 = vmatpush1.msra.mxu0 0.0
    %115 = vmatprep.subr.mxu0 0.0
    %116 = vmatpush1.msra.mxu0 0.0
    %117 = vmatprep.subr.mxu0 0.0
    %118 = vmatpush1.msra.mxu0 0.0
    %119 = vmatprep.subr.mxu0 0.0
    %120 = vmatpush1.msra.mxu0 0.0
    %121 = vmatprep.subr.mxu0 0.0
    %122 = vmatpush1.msra.mxu0 0.0
    %123 = vmatprep.subr.mxu0 0.0
    %124 = vmatpush1.msra.mxu0 0.0
    %125 = vmatprep.subr.mxu0 0.0
    %126 = vmatpush1.msra.mxu0 0.0
    %127 = vmatprep.mubr.f32.mxu0 0.0
    %128 = vmatmul.mubr.f32.gmra.mrb[0].mxu0 %v58
    %v129 = vpop.f32.mrb[0].mxu0
    %v130 = vadd.f32 %v54, %v129
    %v131 = vpop.f32.mrb[0].mxu0
    %132 = vmatprep.mubr.f32.mxu0 0.0
    %133 = vmatmul.mubr.f32.gmra.mrb[0].mxu0 %v61
    %v134 = vpop.f32.mrb[0].mxu0
    %v135 = vadd.f32 %v54, %v134
    %v136 = vpop.f32.mrb[0].mxu0
    %137 = vdwg.mxu0
    %vm138 = vcmask 523264
    %139 = vst.msk [vmem:[#allocation7] sm:$0xff] %vm138, %v130
    %140 = vst.msk [vmem:[#allocation7 + $0x8] sm:$0xff] %vm138, %v135
    // Predicated region
    $region22: #{output_classifier.1} parent=1 // pred_check
      _
    $region23: #{output_classifier.1} parent=1 // pred_check_branch
      %142 = sbr.rel (0) target = $region25
    $region24: #{output_classifier.1} parent=1 // pred_region
      %s144 = ssub.s32 256, 256
      %145 = vsyncadd [#allocation4], %s144
      %s146 = sshll.u32 [#allocation7], 4
      %s147 = int_to_ptr.vmem [resolvable:$true] %s146
      %152 = dma.vmem_to_hbm [thread:$0]  %s147, 256, %s3, [#allocation4], 128, 128, 8
    $region25: #{output_classifier.1} parent=1 // pred_fallthru
      _
    // Predicated region
    $region26: #{output_classifier.1} parent=1 // pred_check
      _
    $region27: #{output_classifier.1} parent=1 // pred_check_branch
      %154 = sbr.rel (0) target = $region29
    $region28: #{output_classifier.1} parent=1 // pred_region
      %155 = dma.done [#allocation4], 256
    $region29: #{output_classifier.1} parent=1 // pred_fallthru
      _
    %156 = vsyncpa [#allocation3], 1
    %157 = vsyncpa [#allocation6], 1
    %158 = vsyncpa [#allocation4], 1

</llo_original>
